<compile_context>
chip_gen: v5e
topology: v5e:2x2
jax: 0.10.0
libtpu: 0.0.40
codegen_flags: <defaults>
</compile_context>

<pallas_src>
import functools

import jax
import jax.numpy as jnp
from jax import lax
from jax.experimental import pallas as pl
from jax.experimental.pallas import tpu as pltpu


def _self_attention_kernel(x_ref, wqkvT_ref, bqkv_ref, o_ref, *, s_valid):
    Bt, Sp, Dp = x_ref.shape

    # Fused QKV projection: one MXU matmul over all Bt*Sp rows.
    x2d = x_ref[...].reshape(Bt * Sp, Dp)
    qkv = jnp.dot(x2d, wqkvT_ref[...], preferred_element_type=jnp.float32)
    qkv = qkv + bqkv_ref[...]
    qkv = qkv.reshape(Bt, Sp, 3 * Dp)
    # Lane-aligned static slices (each chunk starts at a multiple of 128).
    q = qkv[:, :, 0 * Dp:1 * Dp]
    k = qkv[:, :, 1 * Dp:2 * Dp]
    v = qkv[:, :, 2 * Dp:3 * Dp]

    # attention_scores = q @ k^T batched over Bt, expressed as a contraction on
    # the shared feature axis (no explicit transpose of k).
    scores = lax.dot_general(
        q, k, dimension_numbers=(((2,), (2,)), ((0,), (0,))),
        preferred_element_type=jnp.float32)                      # (Bt, Sp, Sp)

    if s_valid != Sp:
        # Mask padded key positions so they receive ~zero softmax weight.
        kpos = lax.broadcasted_iota(jnp.int32, scores.shape, 2)
        scores = jnp.where(kpos < s_valid, scores, -1e30)

    # Numerically-stable softmax with the divide deferred past probs @ v.
    m = jnp.max(scores, axis=-1, keepdims=True)
    e = jnp.exp(scores - m)
    denom = jnp.sum(e, axis=-1, keepdims=True)

    out_un = lax.dot_general(
        e, v, dimension_numbers=(((2,), (1,)), ((0,), (0,))),
        preferred_element_type=jnp.float32)                      # (Bt, Sp, Dp)

    inv = pl.reciprocal(denom, approx=True)                      # EUP slot
    o_ref[...] = (out_un * inv).astype(o_ref.dtype)


def self_attention(x, wq, bq, wk, bk, wv, bv, *, block_b=None):
    """x: (B, S, D); w*: (D, D) in PyTorch (out, in) layout; b*: (D,)."""
    B, S, D = x.shape
    dtype = x.dtype

    Dp = pl.cdiv(D, 128) * 128      # lane-dense feature dim
    Sp = pl.cdiv(S, 8) * 8          # sublane-aligned sequence dim

    # Fused, pre-transposed, zero-padded QKV weight (Dp, 3*Dp) and bias (1, 3*Dp).
    wqkvT = jnp.zeros((Dp, 3 * Dp), dtype)
    bqkv = jnp.zeros((1, 3 * Dp), dtype)
    for i, (w, b) in enumerate(((wq, bq), (wk, bk), (wv, bv))):
        wqkvT = wqkvT.at[:D, i * Dp:i * Dp + D].set(w.T.astype(dtype))
        bqkv = bqkv.at[0, i * Dp:i * Dp + D].set(b.astype(dtype))

    xp = x
    if (Sp, Dp) != (S, D):
        xp = jnp.zeros((B, Sp, Dp), dtype).at[:, :S, :D].set(x)

    # Batch several sequences per grid step so the projection matmul has a
    # reasonable number of rows; keep block_b a divisor of B so blocks are full.
    if block_b is None:
        block_b = min(B, max(1, 256 // Sp))
    block_b = max(1, min(block_b, B))
    while B % block_b:
        block_b -= 1

    x_spec = pl.BlockSpec((block_b, Sp, Dp), lambda b: (b, 0, 0))
    # Weights/bias are grid-invariant (constant index_map) and small at these
    # sizes, so the default buffering is acceptable.
    w_spec = pl.BlockSpec((Dp, 3 * Dp), lambda b: (0, 0))
    b_spec = pl.BlockSpec((1, 3 * Dp), lambda b: (0, 0))

    out = pl.pallas_call(
        functools.partial(_self_attention_kernel, s_valid=S),
        out_shape=jax.ShapeDtypeStruct((B, Sp, Dp), dtype),
        grid_spec=pltpu.PrefetchScalarGridSpec(
            num_scalar_prefetch=0,
            grid=(B // block_b,),
            in_specs=[x_spec, w_spec, b_spec],
            out_specs=x_spec,
        ),
        compiler_params=pltpu.CompilerParams(
            dimension_semantics=("parallel",)),
    )(xp, wqkvT, bqkv)

    if (Sp, Dp) != (S, D):
        out = out[:, :S, :D]
    return out


def _reference(x, wq, bq, wk, bk, wv, bv):
    q = jnp.einsum("bsd,ed->bse", x, wq) + bq
    k = jnp.einsum("bsd,ed->bse", x, wk) + bk
    v = jnp.einsum("bsd,ed->bse", x, wv) + bv
    scores = jnp.einsum("bqd,bkd->bqk", q, k)
    probs = jax.nn.softmax(scores, axis=-1)
    return jnp.einsum("bqk,bkd->bqd", probs, v)


if __name__ == "__main__":
    B, S, D = 2, 8, 32
    key = jax.random.PRNGKey(0)
    kx, kq, kbq, kk, kbk, kv, kbv = jax.random.split(key, 7)

    # Deterministic parameter init (PyTorch nn.Linear-style uniform bounds).
    bound = 1.0 / (D ** 0.5)
    x = jax.random.normal(kx, (B, S, D), dtype=jnp.float32)
    wq = jax.random.uniform(kq, (D, D), jnp.float32, -bound, bound)
    bq = jax.random.uniform(kbq, (D,), jnp.float32, -bound, bound)
    wk = jax.random.uniform(kk, (D, D), jnp.float32, -bound, bound)
    bk = jax.random.uniform(kbk, (D,), jnp.float32, -bound, bound)
    wv = jax.random.uniform(kv, (D, D), jnp.float32, -bound, bound)
    bv = jax.random.uniform(kbv, (D,), jnp.float32, -bound, bound)

    out = self_attention(x, wq, bq, wk, bk, wv, bv)
    jax.block_until_ready(out)

    ref = _reference(x, wq, bq, wk, bk, wv, bv)
    assert out.shape == (B, S, D)
    # Slightly relaxed tolerance: the softmax denominator uses the EUP
    # approximate reciprocal (pl.reciprocal(..., approx=True)).
    assert jnp.allclose(out, ref, atol=2e-3, rtol=2e-3), "mismatch vs reference"

    print("KERNEL_OK")
</pallas_src>

<mosaic_0001>
module attributes {stable_mosaic.version = 11 : i64} {
  func.func @_self_attention_kernel(%arg0: i32, %arg1: memref<2x8x128xf32, #tpu.memory_space<vmem>>, %arg2: memref<128x384xf32, #tpu.memory_space<vmem>>, %arg3: memref<1x384xf32, #tpu.memory_space<vmem>>, %arg4: memref<2x8x128xf32, #tpu.memory_space<vmem>>) attributes {dimension_semantics = [#tpu.dimension_semantics<parallel>], iteration_bounds = array<i64: 1>, scalar_prefetch = 0 : i64, scratch_operands = 0 : i64, tpu.core_type = #tpu.core_type<tc>, window_params = [{transform_indices = @transform_0, window_bounds = array<i64: 2, 8, 128>}, {pipeline_mode = #tpu.pipeline_mode<synchronous>, transform_indices = @transform_1, window_bounds = array<i64: 128, 384>}, {pipeline_mode = #tpu.pipeline_mode<synchronous>, transform_indices = @transform_2, window_bounds = array<i64: 1, 384>}, {transform_indices = @transform_3, window_bounds = array<i64: 2, 8, 128>}]} {
    %c0 = arith.constant 0 : index
    %c0_0 = arith.constant 0 : index
    %c0_1 = arith.constant 0 : index
    %0 = vector.load %arg1[%c0, %c0_0, %c0_1] : memref<2x8x128xf32, #tpu.memory_space<vmem>>, vector<2x8x128xf32>
    %1 = vector.shape_cast %0 : vector<2x8x128xf32> to vector<16x128xf32>
    %c0_2 = arith.constant 0 : index
    %c0_3 = arith.constant 0 : index
    %2 = vector.load %arg2[%c0_2, %c0_3] : memref<128x384xf32, #tpu.memory_space<vmem>>, vector<128x384xf32>
    %cst = arith.constant dense<0.000000e+00> : vector<16x384xf32>
    %3 = tpu.matmul %1, %2, %cst {dimension_numbers = #tpu.dot_dimension_numbers<[1], [0], [0], [1], [0, 0, 1, 1], [], []>} : vector<16x128xf32>, vector<128x384xf32>, vector<16x384xf32> -> vector<16x384xf32>
    %c0_4 = arith.constant 0 : index
    %c0_5 = arith.constant 0 : index
    %4 = vector.load %arg3[%c0_4, %c0_5] : memref<1x384xf32, #tpu.memory_space<vmem>>, vector<1x384xf32>
    %5 = vector.broadcast %4 : vector<1x384xf32> to vector<16x384xf32>
    %6 = arith.addf %3, %5 : vector<16x384xf32>
    %7 = vector.shape_cast %6 : vector<16x384xf32> to vector<2x8x384xf32>
    %8 = vector.extract_strided_slice %7 {offsets = [0, 0, 0], sizes = [2, 8, 128], strides = [1, 1, 1]} : vector<2x8x384xf32> to vector<2x8x128xf32>
    %9 = vector.extract_strided_slice %7 {offsets = [0, 0, 128], sizes = [2, 8, 128], strides = [1, 1, 1]} : vector<2x8x384xf32> to vector<2x8x128xf32>
    %10 = vector.extract_strided_slice %7 {offsets = [0, 0, 256], sizes = [2, 8, 128], strides = [1, 1, 1]} : vector<2x8x384xf32> to vector<2x8x128xf32>
    %cst_6 = arith.constant dense<0.000000e+00> : vector<2x8x8xf32>
    %11 = tpu.matmul %8, %9, %cst_6 {dimension_numbers = #tpu.dot_dimension_numbers<[2], [2], [1], [1], [0, 0, 0, 1, 1, 1], [0], [0]>} : vector<2x8x128xf32>, vector<2x8x128xf32>, vector<2x8x8xf32> -> vector<2x8x8xf32>
    %cst_7 = arith.constant dense<0xFF800000> : vector<2x8xf32>
    %12 = vector.multi_reduction <maximumf>, %11, %cst_7 [2] : vector<2x8x8xf32> to vector<2x8xf32>
    %13 = vector.shape_cast %12 : vector<2x8xf32> to vector<2x8x1xf32>
    %14 = vector.broadcast %13 : vector<2x8x1xf32> to vector<2x8x8xf32>
    %15 = arith.subf %11, %14 : vector<2x8x8xf32>
    %16 = math.exp %15 : vector<2x8x8xf32>
    %cst_8 = arith.constant dense<0.000000e+00> : vector<2x8xf32>
    %17 = vector.multi_reduction <add>, %16, %cst_8 [2] : vector<2x8x8xf32> to vector<2x8xf32>
    %18 = vector.shape_cast %17 : vector<2x8xf32> to vector<2x8x1xf32>
    %cst_9 = arith.constant dense<0.000000e+00> : vector<2x8x128xf32>
    %19 = tpu.matmul %16, %10, %cst_9 {dimension_numbers = #tpu.dot_dimension_numbers<[2], [1], [1], [2], [0, 0, 0, 1, 1, 2], [0], [0]>} : vector<2x8x8xf32>, vector<2x8x128xf32>, vector<2x8x128xf32> -> vector<2x8x128xf32>
    %20 = tpu.reciprocal %18 {approx = true} : vector<2x8x1xf32> -> vector<2x8x1xf32>
    %21 = vector.broadcast %20 : vector<2x8x1xf32> to vector<2x8x128xf32>
    %22 = arith.mulf %19, %21 : vector<2x8x128xf32>
    %c0_10 = arith.constant 0 : index
    %c0_11 = arith.constant 0 : index
    %c0_12 = arith.constant 0 : index
    %23 = vector.load %arg4[%c0_10, %c0_11, %c0_12] : memref<2x8x128xf32, #tpu.memory_space<vmem>>, vector<2x8x128xf32>
    tpu.vector_store %arg4[%c0_10, %c0_11, %c0_12], %22 {strides = array<i32>} : memref<2x8x128xf32, #tpu.memory_space<vmem>>, vector<2x8x128xf32>,
    return
  }
  func.func @transform_0(%arg0: i32) -> (i32, i32, i32) {
    %c0_i32 = arith.constant 0 : i32
    %c0_i32_0 = arith.constant 0 : i32
    %c0_i32_1 = arith.constant 0 : i32
    return %arg0, %c0_i32, %c0_i32_0 : i32, i32, i32
  }
  func.func @transform_1(%arg0: i32) -> (i32, i32) {
    %c0_i32 = arith.constant 0 : i32
    %c0_i32_0 = arith.constant 0 : i32
    %c0_i32_1 = arith.constant 0 : i32
    return %c0_i32, %c0_i32_0 : i32, i32
  }
  func.func @transform_2(%arg0: i32) -> (i32, i32) {
    %c0_i32 = arith.constant 0 : i32
    %c0_i32_0 = arith.constant 0 : i32
    %c0_i32_1 = arith.constant 0 : i32
    return %c0_i32, %c0_i32_0 : i32, i32
  }
  func.func @transform_3(%arg0: i32) -> (i32, i32, i32) {
    %c0_i32 = arith.constant 0 : i32
    %c0_i32_0 = arith.constant 0 : i32
    %c0_i32_1 = arith.constant 0 : i32
    return %arg0, %c0_i32, %c0_i32_0 : i32, i32, i32
  }
}

</mosaic_0001>

<llo_original>
// kernel: tpu_custom_call.1
$region0: #{tpu_custom_call.1}
  #allocation0 [shape = 'u32[]', space=smem, size = 0x4, offset = 0x4, fixed_abs, tag = 'smem constant byte address 0x4 - core index']
  #allocation1 [shape = 'u32[72,128]{1,0:T(1,128)}', space=vmem, size = 0x9000, scoped, tag = 'internal scratch']
  %s0 = inlined_call_operand.hbm [shape: f32[2,8,128], index: 0, kind: input, shape index: {}]
  %s1 = inlined_call_operand.hbm [shape: f32[128,384], index: 1, kind: input, shape index: {}]
  %s2 = inlined_call_operand.hbm [shape: f32[1,384], index: 2, kind: input, shape index: {}]
  %s3 = inlined_call_operand.hbm [shape: f32[2,8,128], index: 3, kind: output, shape index: {}]
  %s4 = sld [smem:[#allocation0]]
  $region34: #{tpu_custom_call.1} parent=0
    _
  %s6 = ssub.s32 1, %s4
  %s7 = scalar_select 0, %s6, %s4
  $region1: #{tpu_custom_call.1} parent=0
    #allocation2 [shape = 'u8[8192]{0}', space=vmem, size = 0x2000, scoped, tag = 'input window, operand 0, single buffered']
    #allocation3 [shape = 's32[1]{0}', space=sflag, size = 0x4, scoped, tag = 'scoped memory for tpu_custom_call.1']
    #allocation4 [shape = 's32[1]{0}', space=sflag, size = 0x4, scoped, tag = 'scoped memory for tpu_custom_call.1']
    #allocation5 [shape = 'u8[196608]{0}', space=vmem, size = 0x30000, scoped, tag = 'input window, operand 1, single buffered']
    #allocation6 [shape = 's32[1]{0}', space=sflag, size = 0x4, scoped, tag = 'scoped memory for tpu_custom_call.1']
    #allocation7 [shape = 'u8[1536]{0}', space=vmem, size = 0x800, scoped, tag = 'input window, operand 2, single buffered']
    #allocation8 [shape = 'u8[8192]{0}', space=vmem, size = 0x2000, scoped, tag = 'output window, operand 0, single buffered']
    %8 = vsyncpa [#allocation3], 0
    %9 = vsyncpa [#allocation6], 0
    %10 = vsyncpa [#allocation4], 0
    // Predicated region
    $region2: #{tpu_custom_call.1} parent=1 // pred_check
      _
    $region3: #{tpu_custom_call.1} parent=1 // pred_check_branch
      %12 = sbr.rel (0) target = $region5
    $region4: #{tpu_custom_call.1} parent=1 // pred_region
      %14 = vsyncadd [#allocation3], 0
      %s15 = sshll.u32 %s0, 4
      %s16 = int_to_ptr.hbm [resolvable:$true] %s15
      %s17 = sshll.u32 [#allocation2], 4
      %s18 = int_to_ptr.vmem [resolvable:$true] %s17
      %23 = dma.hbm_to_vmem [thread:$0]  %s16, 256, %s18, [#allocation3], 128, 128, 8
    $region5: #{tpu_custom_call.1} parent=1 // pred_fallthru
      _
    // Predicated region
    $region6: #{tpu_custom_call.1} parent=1 // pred_check
      _
    $region7: #{tpu_custom_call.1} parent=1 // pred_check_branch
      %25 = sbr.rel (0) target = $region9
    $region8: #{tpu_custom_call.1} parent=1 // pred_region
      %27 = vsyncadd [#allocation6], 0
      %s28 = sshll.u32 %s1, 4
      %s29 = int_to_ptr.hbm [resolvable:$true] %s28
      %s30 = sshll.u32 [#allocation5], 4
      %s31 = int_to_ptr.vmem [resolvable:$true] %s30
      %36 = dma.hbm_to_vmem [thread:$0]  %s29, 6144, %s31, [#allocation6], 384, 384, 24
    $region9: #{tpu_custom_call.1} parent=1 // pred_fallthru
      _
    // Predicated region
    $region10: #{tpu_custom_call.1} parent=1 // pred_check
      _
    $region11: #{tpu_custom_call.1} parent=1 // pred_check_branch
      %38 = sbr.rel (0) target = $region13
    $region12: #{tpu_custom_call.1} parent=1 // pred_region
      %40 = vsyncadd [#allocation6], 0
      %s42 = sshll.u32 %s2, 4
      %s43 = int_to_ptr.hbm [resolvable:$true] %s42
      %s44 = sshll.u32 [#allocation7], 4
      %s45 = int_to_ptr.vmem [resolvable:$true] %s44
      %47 = dma.hbm_to_vmem [thread:$0]  %s43, 48, %s45, [#allocation6]
    $region13: #{tpu_custom_call.1} parent=1 // pred_fallthru
      _
    // Predicated region
    $region14: #{tpu_custom_call.1} parent=1 // pred_check
      _
    $region15: #{tpu_custom_call.1} parent=1 // pred_check_branch
      %49 = sbr.rel (0) target = $region17
    $region16: #{tpu_custom_call.1} parent=1 // pred_region
      %51 = dma.done [#allocation3], 256
    $region17: #{tpu_custom_call.1} parent=1 // pred_fallthru
      _
    // Predicated region
    $region18: #{tpu_custom_call.1} parent=1 // pred_check
      _
    $region19: #{tpu_custom_call.1} parent=1 // pred_check_branch
      %53 = sbr.rel (0) target = $region21
    $region20: #{tpu_custom_call.1} parent=1 // pred_region
      %55 = dma.done [#allocation6], 6144
    $region21: #{tpu_custom_call.1} parent=1 // pred_fallthru
      _
    // Predicated region
    $region22: #{tpu_custom_call.1} parent=1 // pred_check
      _
    $region23: #{tpu_custom_call.1} parent=1 // pred_check_branch
      %57 = sbr.rel (0) target = $region25
    $region24: #{tpu_custom_call.1} parent=1 // pred_region
      %59 = dma.done [#allocation6], 48
    $region25: #{tpu_custom_call.1} parent=1 // pred_fallthru
      _
    %v60 = vld [vmem:[#allocation2] sm:$0xff]
    %v61 = vld [vmem:[#allocation2 + $0x8] sm:$0xff]
    %v62 = vld [vmem:[#allocation5] sm:$0xff]
    %v63 = vld [vmem:[#allocation5 + $0x8] sm:$0xff]
    %v64 = vld [vmem:[#allocation5 + $0x10] sm:$0xff]
    %v65 = vld [vmem:[#allocation5 + $0x18] sm:$0xff]
    %v66 = vld [vmem:[#allocation5 + $0x20] sm:$0xff]
    %v67 = vld [vmem:[#allocation5 + $0x28] sm:$0xff]
    %v68 = vld [vmem:[#allocation5 + $0x30] sm:$0xff]
    %v69 = vld [vmem:[#allocation5 + $0x38] sm:$0xff]
    %v70 = vld [vmem:[#allocation5 + $0x40] sm:$0xff]
    %v71 = vld [vmem:[#allocation5 + $0x48] sm:$0xff]
    %v72 = vld [vmem:[#allocation5 + $0x50] sm:$0xff]
    %v73 = vld [vmem:[#allocation5 + $0x58] sm:$0xff]
    %v74 = vld [vmem:[#allocation5 + $0x60] sm:$0xff]
    %v75 = vld [vmem:[#allocation5 + $0x68] sm:$0xff]
    %v76 = vld [vmem:[#allocation5 + $0x70] sm:$0xff]
    %v77 = vld [vmem:[#allocation5 + $0x78] sm:$0xff]
    %v78 = vld [vmem:[#allocation5 + $0x80] sm:$0xff]
    %v79 = vld [vmem:[#allocation5 + $0x88] sm:$0xff]
    %v80 = vld [vmem:[#allocation5 + $0x90] sm:$0xff]
    %v81 = vld [vmem:[#allocation5 + $0x98] sm:$0xff]
    %v82 = vld [vmem:[#allocation5 + $0xa0] sm:$0xff]
    %v83 = vld [vmem:[#allocation5 + $0xa8] sm:$0xff]
    %v84 = vld [vmem:[#allocation5 + $0xb0] sm:$0xff]
    %v85 = vld [vmem:[#allocation5 + $0xb8] sm:$0xff]
    %v86 = vld [vmem:[#allocation5 + $0xc0] sm:$0xff]
    %v87 = vld [vmem:[#allocation5 + $0xc8] sm:$0xff]
    %v88 = vld [vmem:[#allocation5 + $0xd0] sm:$0xff]
    %v89 = vld [vmem:[#allocation5 + $0xd8] sm:$0xff]
    %v90 = vld [vmem:[#allocation5 + $0xe0] sm:$0xff]
    %v91 = vld [vmem:[#allocation5 + $0xe8] sm:$0xff]
    %v92 = vld [vmem:[#allocation5 + $0xf0] sm:$0xff]
    %v93 = vld [vmem:[#allocation5 + $0xf8] sm:$0xff]
    %v94 = vld [vmem:[#allocation5 + $0x100] sm:$0xff]
    %v95 = vld [vmem:[#allocation5 + $0x108] sm:$0xff]
    %v96 = vld [vmem:[#allocation5 + $0x110] sm:$0xff]
    %v97 = vld [vmem:[#allocation5 + $0x118] sm:$0xff]
    %v98 = vld [vmem:[#allocation5 + $0x120] sm:$0xff]
    %v99 = vld [vmem:[#allocation5 + $0x128] sm:$0xff]
    %v100 = vld [vmem:[#allocation5 + $0x130] sm:$0xff]
    %v101 = vld [vmem:[#allocation5 + $0x138] sm:$0xff]
    %v102 = vld [vmem:[#allocation5 + $0x140] sm:$0xff]
    %v103 = vld [vmem:[#allocation5 + $0x148] sm:$0xff]
    %v104 = vld [vmem:[#allocation5 + $0x150] sm:$0xff]
    %v105 = vld [vmem:[#allocation5 + $0x158] sm:$0xff]
    %v106 = vld [vmem:[#allocation5 + $0x160] sm:$0xff]
    %v107 = vld [vmem:[#allocation5 + $0x168] sm:$0xff]
    %v108 = vld [vmem:[#allocation5 + $0x170] sm:$0xff]
    %v109 = vld [vmem:[#allocation5 + $0x178] sm:$0xff]
    %v110 = vld [vmem:[#allocation7] sm:$0x7]
    %v112 = vperm.slane %v110, 0
    %v113 = vperm.slane %v110, 1
    %v114 = vperm.slane %v110, 2
    %118 = vmatpush.msra.mxu0 %v107
    %119 = vmatpush.msra.mxu0 %v104
    %120 = vmatpush.msra.mxu0 %v101
    %121 = vmatpush.msra.mxu0 %v98
    %122 = vmatpush.msra.mxu0 %v95
    %123 = vmatpush.msra.mxu0 %v92
    %124 = vmatpush.msra.mxu0 %v89
    %125 = vmatpush.msra.mxu0 %v86
    %126 = vmatpush.msra.mxu0 %v83
    %127 = vmatpush.msra.mxu0 %v80
    %128 = vmatpush.msra.mxu0 %v77
    %129 = vmatpush.msra.mxu0 %v74
    %130 = vmatpush.msra.mxu0 %v71
    %131 = vmatpush.msra.mxu0 %v68
    %132 = vmatpush.msra.mxu0 %v65
    %133 = vmatpush.msra.mxu0 %v62
    %134 = vmatmul.f32.gmra.mxu0 %v60
    %v135 = vpop.f32.mrf.mxu0
    %v136 = vadd.f32 %v112, %v135
    %137 = vmatmul.f32.gmra.mxu0 %v61
    %v138 = vpop.f32.mrf.mxu0
    %v139 = vadd.f32 %v112, %v138
    %140 = vdwg.mxu0
    %141 = vmatpush.msra.mxu0 %v108
    %142 = vmatpush.msra.mxu0 %v105
    %143 = vmatpush.msra.mxu0 %v102
    %144 = vmatpush.msra.mxu0 %v99
    %145 = vmatpush.msra.mxu0 %v96
    %146 = vmatpush.msra.mxu0 %v93
    %147 = vmatpush.msra.mxu0 %v90
    %148 = vmatpush.msra.mxu0 %v87
    %149 = vmatpush.msra.mxu0 %v84
    %150 = vmatpush.msra.mxu0 %v81
    %151 = vmatpush.msra.mxu0 %v78
    %152 = vmatpush.msra.mxu0 %v75
    %153 = vmatpush.msra.mxu0 %v72
    %154 = vmatpush.msra.mxu0 %v69
    %155 = vmatpush.msra.mxu0 %v66
    %156 = vmatpush.msra.mxu0 %v63
    %157 = vmatmul.f32.gmra.mxu0 %v60
    %v158 = vpop.f32.mrf.mxu0
    %v159 = vadd.f32 %v113, %v158
    %160 = vmatmul.f32.gmra.mxu0 %v61
    %v161 = vpop.f32.mrf.mxu0
    %v162 = vadd.f32 %v113, %v161
    %163 = vdwg.mxu0
    %164 = vmatpush.msra.mxu0 %v109
    %165 = vmatpush.msra.mxu0 %v106
    %166 = vmatpush.msra.mxu0 %v103
    %167 = vmatpush.msra.mxu0 %v100
    %168 = vmatpush.msra.mxu0 %v97
    %169 = vmatpush.msra.mxu0 %v94
    %170 = vmatpush.msra.mxu0 %v91
    %171 = vmatpush.msra.mxu0 %v88
    %172 = vmatpush.msra.mxu0 %v85
    %173 = vmatpush.msra.mxu0 %v82
    %174 = vmatpush.msra.mxu0 %v79
    %175 = vmatpush.msra.mxu0 %v76
    %176 = vmatpush.msra.mxu0 %v73
    %177 = vmatpush.msra.mxu0 %v70
    %178 = vmatpush.msra.mxu0 %v67
    %179 = vmatpush.msra.mxu0 %v64
    %180 = vmatmul.f32.gmra.mxu0 %v60
    %v181 = vpop.f32.mrf.mxu0
    %v182 = vadd.f32 %v114, %v181
    %183 = vmatmul.f32.gmra.mxu0 %v61
    %v184 = vpop.f32.mrf.mxu0
    %v185 = vadd.f32 %v114, %v184
    %186 = vdwg.mxu0
    %187 = vmatpush.xpose.msra.mxu0 0.0
    %188 = vmatpush.xpose.msra.mxu0 0.0
    %189 = vmatpush.xpose.msra.mxu0 0.0
    %190 = vmatpush.xpose.msra.mxu0 0.0
    %191 = vmatpush.xpose.msra.mxu0 0.0
    %192 = vmatpush.xpose.msra.mxu0 0.0
    %193 = vmatpush.xpose.msra.mxu0 0.0
    %194 = vmatpush.xpose.msra.mxu0 0.0
    %195 = vmatpush.xpose.msra.mxu0 0.0
    %196 = vmatpush.xpose.msra.mxu0 0.0
    %197 = vmatpush.xpose.msra.mxu0 0.0
    %198 = vmatpush.xpose.msra.mxu0 0.0
    %199 = vmatpush.xpose.msra.mxu0 0.0
    %200 = vmatpush.xpose.msra.mxu0 0.0
    %201 = vmatpush.xpose.msra.mxu0 0.0
    %202 = vmatpush.xpose.msra.mxu0 %v159
    %203 = vmatmul.f32.gmra.mxu0 %v136
    %v204 = vpop.f32.mrf.mxu0
    %v205 = vadd.f32 0.0, %v204
    %206 = vdwg.mxu0
    %207 = vmatpush.xpose.msra.mxu0 0.0
    %208 = vmatpush.xpose.msra.mxu0 0.0
    %209 = vmatpush.xpose.msra.mxu0 0.0
    %210 = vmatpush.xpose.msra.mxu0 0.0
    %211 = vmatpush.xpose.msra.mxu0 0.0
    %212 = vmatpush.xpose.msra.mxu0 0.0
    %213 = vmatpush.xpose.msra.mxu0 0.0
    %214 = vmatpush.xpose.msra.mxu0 0.0
    %215 = vmatpush.xpose.msra.mxu0 0.0
    %216 = vmatpush.xpose.msra.mxu0 0.0
    %217 = vmatpush.xpose.msra.mxu0 0.0
    %218 = vmatpush.xpose.msra.mxu0 0.0
    %219 = vmatpush.xpose.msra.mxu0 0.0
    %220 = vmatpush.xpose.msra.mxu0 0.0
    %221 = vmatpush.xpose.msra.mxu0 0.0
    %222 = vmatpush.xpose.msra.mxu0 %v162
    %223 = vmatmul.f32.gmra.mxu0 %v139
    %v224 = vpop.f32.mrf.mxu0
    %v225 = vadd.f32 0.0, %v224
    %226 = vdwg.mxu0
    %vm227 = vcmask 64512
    %v228 = vsel %vm227, %v205, -inf
    %229 = vmax.xlane.f32.xlu0 %v228
    %v230 = vpop.xlane.xlu0 %229
    %v231 = vsel %vm227, %v225, -inf
    %232 = vmax.xlane.f32.xlu0 %v231
    %v233 = vpop.xlane.xlu0 %232
    %v234 = vsub.f32 %v205, %v230
    %v235 = vsub.f32 %v225, %v233
    %v236 = vmul.f32 %v234, 1.442695
    %v237 = vpow.pop %v236
    %v238 = vmul.f32 %v235, 1.442695
    %v239 = vpow.pop %v238
    %v240 = vsel %vm227, %v237, 0.0
    %241 = vadd.xlane.f32.xlu0 %v240
    %v242 = vpop.xlane.xlu0 %241
    %v243 = vsel %vm227, %v239, 0.0
    %244 = vadd.xlane.f32.xlu0 %v243
    %v245 = vpop.xlane.xlu0 %244
    %v247 = vsel %vm227, %v237, 0
    %249 = vmatpush.msra.mxu0 0.0
    %250 = vmatpush.msra.mxu0 0.0
    %251 = vmatpush.msra.mxu0 0.0
    %252 = vmatpush.msra.mxu0 0.0
    %253 = vmatpush.msra.mxu0 0.0
    %254 = vmatpush.msra.mxu0 0.0
    %255 = vmatpush.msra.mxu0 0.0
    %256 = vmatpush.msra.mxu0 0.0
    %257 = vmatpush.msra.mxu0 0.0
    %258 = vmatpush.msra.mxu0 0.0
    %259 = vmatpush.msra.mxu0 0.0
    %260 = vmatpush.msra.mxu0 0.0
    %261 = vmatpush.msra.mxu0 0.0
    %262 = vmatpush.msra.mxu0 0.0
    %263 = vmatpush.msra.mxu0 0.0
    %264 = vmatpush.msra.mxu0 %v182
    %265 = vmatmul.f32.gmra.mxu0 %v247
    %v266 = vpop.f32.mrf.mxu0
    %v267 = vadd.f32 0.0, %v266
    %268 = vdwg.mxu0
    %v270 = vsel %vm227, %v239, 0
    %272 = vmatpush.msra.mxu0 0.0
    %273 = vmatpush.msra.mxu0 0.0
    %274 = vmatpush.msra.mxu0 0.0
    %275 = vmatpush.msra.mxu0 0.0
    %276 = vmatpush.msra.mxu0 0.0
    %277 = vmatpush.msra.mxu0 0.0
    %278 = vmatpush.msra.mxu0 0.0
    %279 = vmatpush.msra.mxu0 0.0
    %280 = vmatpush.msra.mxu0 0.0
    %281 = vmatpush.msra.mxu0 0.0
    %282 = vmatpush.msra.mxu0 0.0
    %283 = vmatpush.msra.mxu0 0.0
    %284 = vmatpush.msra.mxu0 0.0
    %285 = vmatpush.msra.mxu0 0.0
    %286 = vmatpush.msra.mxu0 0.0
    %287 = vmatpush.msra.mxu0 %v185
    %288 = vmatmul.f32.gmra.mxu0 %v270
    %v289 = vpop.f32.mrf.mxu0
    %v290 = vadd.f32 0.0, %v289
    %291 = vdwg.mxu0
    %v292 = vrcp.pop %v242
    %v293 = vrcp.pop %v245
    %v294 = vmul.f32 %v267, %v292
    %v295 = vmul.f32 %v290, %v293
    %296 = vst [vmem:[#allocation8] sm:$0xff] %v294
    %297 = vst [vmem:[#allocation8 + $0x8] sm:$0xff] %v295
    // Predicated region
    $region26: #{tpu_custom_call.1} parent=1 // pred_check
      _
    $region27: #{tpu_custom_call.1} parent=1 // pred_check_branch
      %299 = sbr.rel (0) target = $region29
    $region28: #{tpu_custom_call.1} parent=1 // pred_region
      %301 = vsyncadd [#allocation4], 0
      %s302 = sshll.u32 [#allocation8], 4
      %s303 = int_to_ptr.vmem [resolvable:$true] %s302
      %s304 = sshll.u32 %s3, 4
      %s305 = int_to_ptr.hbm [resolvable:$true] %s304
      %310 = dma.vmem_to_hbm [thread:$0]  %s303, 256, %s305, [#allocation4], 128, 128, 8
    $region29: #{tpu_custom_call.1} parent=1 // pred_fallthru
      _
    // Predicated region
    $region30: #{tpu_custom_call.1} parent=1 // pred_check
      _
    $region31: #{tpu_custom_call.1} parent=1 // pred_check_branch
      %312 = sbr.rel (0) target = $region33
    $region32: #{tpu_custom_call.1} parent=1 // pred_region
      %314 = dma.done [#allocation4], 256
    $region33: #{tpu_custom_call.1} parent=1 // pred_fallthru
      _
    %315 = vsyncpa [#allocation3], 1
    %316 = vsyncpa [#allocation6], 1
    %317 = vsyncpa [#allocation4], 1

</llo_original>
